<compile_context>
chip_gen: v6e
topology: v6e:2x2x1
jax: 0.10.0
libtpu: 0.0.40
codegen_flags: <defaults>
</compile_context>

<pallas_src>
import functools

import jax
import jax.numpy as jnp
from jax.experimental import pallas as pl
from jax.experimental.pallas import tpu as pltpu


def _round_up(x, m):
    return ((x + m - 1) // m) * m


@functools.lru_cache(maxsize=None)
def _vmem_capacity_bytes():
    """Physical VMEM per TensorCore; conservative 64 MiB fallback (v7x-sized)."""
    try:
        info = pltpu.get_tpu_info()
        cap = int(getattr(info, "vmem_capacity_bytes", 0))
        if cap > 0:
            return cap
    except Exception:
        pass
    return 64 * 1024 * 1024


def _mlp_kernel(x_ref, g_ref, bt_ref, w1_ref, b1_ref, w2_ref, b2_ref,
                o_ref, acc_ref, xn_ref, *, d_true, d_pad):
    """One (row_tile, D) block of LayerNorm -> Linear -> GELU -> Linear.

    Grid = (row tiles, hidden tiles).  The hidden axis is a reduction into the
    f32 accumulator `acc_ref`; the LayerNorm'd activations are computed once
    per row tile (h == 0) and cached in bf16 in `xn_ref`.
    """
    h_idx = pl.program_id(1)

    @pl.when(h_idx == 0)
    def _():
        # --- LayerNorm(embed_dim), eps=1e-5, biased variance (PyTorch) ---
        x = x_ref[...].astype(jnp.float32)
        inv_d = jnp.float32(1.0 / d_true)
        mean = jnp.sum(x, axis=-1, keepdims=True) * inv_d
        diff = x - mean
        if d_true != d_pad:
            # Padded feature lanes must not contribute to the variance.
            lane = jax.lax.broadcasted_iota(jnp.int32, diff.shape, 1)
            diff = jnp.where(lane < d_true, diff, 0.0)
        var = jnp.sum(diff * diff, axis=-1, keepdims=True) * inv_d
        xn = diff * jax.lax.rsqrt(var + jnp.float32(1e-5))
        xn = xn * g_ref[...].astype(jnp.float32) + bt_ref[...].astype(jnp.float32)
        xn_ref[...] = xn.astype(jnp.bfloat16)   # cached bf16 MXU operand
        acc_ref[...] = jnp.zeros_like(acc_ref)

    # --- Linear(D -> tH): bf16 operands on the MXU, f32 accumulation ---
    h = jnp.dot(xn_ref[...], w1_ref[...], preferred_element_type=jnp.float32)
    h = h + b1_ref[...].astype(jnp.float32)
    # --- GELU, exact erf form (PyTorch default approximate='none') ---
    h = 0.5 * h * (1.0 + jax.lax.erf(h * jnp.float32(0.7071067811865476)))
    # --- Linear(tH -> D): bf16 operands, accumulated over hidden tiles ---
    acc_ref[...] += jnp.dot(h.astype(jnp.bfloat16), w2_ref[...],
                            preferred_element_type=jnp.float32)

    @pl.when(h_idx == pl.num_programs(1) - 1)
    def _():
        y = acc_ref[...] + b2_ref[...].astype(jnp.float32)
        o_ref[...] = y.astype(o_ref.dtype)


@jax.jit
def transformer_mlp(embed, params):
    """embed: (B, S, D) -> (B, S, D).  `params` from prepare_params()."""
    B, S, D = embed.shape
    gamma, beta, w1, b1, w2, b2 = params
    H = w1.shape[1]
    N = B * S
    itemsize = jnp.dtype(embed.dtype).itemsize

    # --- generation-aware VMEM budget (per TensorCore on v7x) ---
    vmem_cap = _vmem_capacity_bytes()
    vmem_limit = min(int(0.72 * vmem_cap), 100 * 1024 * 1024)
    budget = int(0.85 * vmem_limit)       # headroom for Mosaic internal scratch

    # --- lane-dense feature dim ---
    D_pad = max(128, _round_up(D, 128))

    # --- row tile: 512 on 128 MiB parts (v5e/v6e), 256 on v7x; shrink for
    #     tiny inputs so a 16-row demo is not padded to 256 rows. ---
    base_tile = 512 if vmem_cap >= 96 * 1024 * 1024 else 256
    tile = min(base_tile, _round_up(N, 16))
    n_pad = _round_up(N, tile)

    # --- hidden tile: keep bf16 W1/W2 fully resident (single-buffered) when
    #     they + the (tile, H) hidden activation fit; otherwise stream H. ---
    H_128 = _round_up(H, 128)
    fixed = (2 * tile * D_pad * itemsize      # x, double-buffered
             + 2 * tile * D_pad * itemsize    # out, double-buffered
             + tile * D_pad * 4               # f32 accumulator scratch
             + tile * D_pad * 2               # bf16 LayerNorm'd x scratch
             + 8 * D_pad * 4)                 # LN params + biases (generous)
    resident = 4 * D_pad * H_128              # bf16 W1 + W2, single-buffered
    act = 6 * tile * H_128                    # f32 hidden + bf16 MXU copy
    if fixed + resident + act <= budget:
        h_tile = H_128
    else:
        per_th = 8 * D_pad + 6 * tile + 16    # dbl-buffered bf16 W tiles + act
        th_max = max(128, ((budget - fixed) // per_th) // 128 * 128)
        th_max = min(th_max, H_128)
        n_chunks = -(-H_128 // th_max)        # ceil -> minimize H padding waste
        h_tile = _round_up(-(-H_128 // n_chunks), 128)
    H_pad = _round_up(H_128, h_tile)
    n_h = H_pad // h_tile
    weights_resident = (n_h == 1)

    # --- pad operands (no-ops for the common D,H % 128 == 0 resident case) ---
    x2d = embed.reshape(N, D)
    if (n_pad, D_pad) != (N, D):
        x2d = jnp.pad(x2d, ((0, n_pad - N), (0, D_pad - D)))

    def _pad2(a, r, c):
        if a.shape == (r, c):
            return a
        return jnp.pad(a, ((0, r - a.shape[0]), (0, c - a.shape[1])))

    gamma_p = _pad2(gamma, 1, D_pad)
    beta_p = _pad2(beta, 1, D_pad)
    w1_p = _pad2(w1, D_pad, H_pad)
    b1_p = _pad2(b1, 1, H_pad)
    w2_p = _pad2(w2, H_pad, D_pad)
    b2_p = _pad2(b2, 1, D_pad)

    def _spec(shape, index_map, single_buffer):
        # Constant-index operands are DMA'd once -> 1 buffer instead of 2.
        if single_buffer:
            return pl.BlockSpec(shape, index_map, pipeline_mode=pl.Buffered(1))
        return pl.BlockSpec(shape, index_map)

    in_specs = [
        pl.BlockSpec((tile, D_pad), lambda i, h: (i, 0)),               # x rows
        _spec((1, D_pad), lambda i, h: (0, 0), True),                   # ln gamma
        _spec((1, D_pad), lambda i, h: (0, 0), True),                   # ln beta
        _spec((D_pad, h_tile), lambda i, h: (0, h), weights_resident),  # W1 bf16
        _spec((1, h_tile), lambda i, h: (0, h), weights_resident),      # b1
        _spec((h_tile, D_pad), lambda i, h: (h, 0), weights_resident),  # W2 bf16
        _spec((1, D_pad), lambda i, h: (0, 0), True),                   # b2
    ]

    kernel = functools.partial(_mlp_kernel, d_true=D, d_pad=D_pad)

    out2d = pl.pallas_call(
        kernel,
        out_shape=jax.ShapeDtypeStruct((n_pad, D_pad), embed.dtype),
        grid_spec=pltpu.PrefetchScalarGridSpec(
            num_scalar_prefetch=0,
            grid=(n_pad // tile, n_h),
            in_specs=in_specs,
            out_specs=pl.BlockSpec((tile, D_pad), lambda i, h: (i, 0)),
            scratch_shapes=[
                pltpu.VMEM((tile, D_pad), jnp.float32),    # f32 accumulator
                pltpu.VMEM((tile, D_pad), jnp.bfloat16),   # cached LN output
            ],
        ),
        compiler_params=pltpu.CompilerParams(
            # Rows are independent (shard across TCs on v7x); hidden axis is a
            # reduction into the accumulator -> "arbitrary".
            dimension_semantics=("parallel", "arbitrary"),
            vmem_limit_bytes=vmem_limit,
        ),
    )(x2d, gamma_p, beta_p, w1_p, b1_p, w2_p, b2_p)

    if (n_pad, D_pad) != (N, D):
        out2d = out2d[:N, :D]
    return out2d.reshape(B, S, D)


def init_params(key, embed_dim, widening_factor=4, dtype=jnp.float32):
    hidden = embed_dim * widening_factor
    k1, k2, k3, k4 = jax.random.split(key, 4)
    # LayerNorm: gamma=1, beta=0 (PyTorch default init)
    gamma = jnp.ones((1, embed_dim), dtype)
    beta = jnp.zeros((1, embed_dim), dtype)
    # Linear layers: uniform(-1/sqrt(fan_in), 1/sqrt(fan_in)) like PyTorch,
    # stored transposed as (in, out).
    lim1 = 1.0 / (embed_dim ** 0.5)
    w1 = jax.random.uniform(k1, (embed_dim, hidden), dtype, -lim1, lim1)
    b1 = jax.random.uniform(k2, (1, hidden), dtype, -lim1, lim1)
    lim2 = 1.0 / (hidden ** 0.5)
    w2 = jax.random.uniform(k3, (hidden, embed_dim), dtype, -lim2, lim2)
    b2 = jax.random.uniform(k4, (1, embed_dim), dtype, -lim2, lim2)
    return (gamma, beta, w1, b1, w2, b2)


def prepare_params(params):
    """One-time conversion OUTSIDE the per-call jit path: MXU weights -> bf16.

    Biases and LayerNorm params stay f32 (tiny, added in f32 in-kernel)."""
    gamma, beta, w1, b1, w2, b2 = params
    return (gamma, beta, w1.astype(jnp.bfloat16), b1,
            w2.astype(jnp.bfloat16), b2)


def _reference(embed, params):
    """Pure-f32 reference matching the PyTorch module."""
    gamma, beta, w1, b1, w2, b2 = params
    x = embed.astype(jnp.float32)
    mean = jnp.mean(x, axis=-1, keepdims=True)
    var = jnp.mean((x - mean) ** 2, axis=-1, keepdims=True)
    xn = (x - mean) / jnp.sqrt(var + 1e-5) * gamma[0] + beta[0]
    h = xn @ w1 + b1[0]
    h = 0.5 * h * (1.0 + jax.lax.erf(h / jnp.sqrt(2.0)))
    y = h @ w2 + b2[0]
    return y.astype(embed.dtype)


if __name__ == "__main__":
    embed_dim = 32
    widening_factor = 4
    batch, seq = 2, 8

    key = jax.random.PRNGKey(0)
    kp, kx = jax.random.split(key)
    params = init_params(kp, embed_dim, widening_factor)
    kernel_params = prepare_params(params)   # bf16 weight cast, once, off-path
    embed = jax.random.normal(kx, (batch, seq, embed_dim), jnp.float32)

    out = transformer_mlp(embed, kernel_params)
    out = jax.block_until_ready(out)

    ref = _reference(embed, params)
    assert out.shape == (batch, seq, embed_dim)
    # bf16 MXU operands with f32 accumulation -> slightly looser tolerance
    # than a pure-f32 comparison.
    assert jnp.allclose(out, ref, atol=2e-2, rtol=2e-2), "mismatch vs reference"

    print("KERNEL_OK")
</pallas_src>

<mosaic_0001>
module attributes {stable_mosaic.version = 11 : i64} {
  func.func @_mlp_kernel(%arg0: i32, %arg1: i32, %arg2: memref<16x128xf32, #tpu.memory_space<vmem>>, %arg3: memref<1x128xf32, #tpu.memory_space<vmem>>, %arg4: memref<1x128xf32, #tpu.memory_space<vmem>>, %arg5: memref<128x128xbf16, #tpu.memory_space<vmem>>, %arg6: memref<1x128xf32, #tpu.memory_space<vmem>>, %arg7: memref<128x128xbf16, #tpu.memory_space<vmem>>, %arg8: memref<1x128xf32, #tpu.memory_space<vmem>>, %arg9: memref<16x128xf32, #tpu.memory_space<vmem>>, %arg10: memref<16x128xf32, #tpu.memory_space<vmem>>, %arg11: memref<16x128xbf16, #tpu.memory_space<vmem>>) attributes {dimension_semantics = [#tpu.dimension_semantics<parallel>, #tpu.dimension_semantics<arbitrary>], iteration_bounds = array<i64: 1, 1>, scalar_prefetch = 0 : i64, scratch_operands = 2 : i64, tpu.core_type = #tpu.core_type<tc>, window_params = [{transform_indices = @transform_0, window_bounds = array<i64: 16, 128>}, {pipeline_mode = #tpu.pipeline_mode<synchronous>, transform_indices = @transform_1, window_bounds = array<i64: 1, 128>}, {pipeline_mode = #tpu.pipeline_mode<synchronous>, transform_indices = @transform_2, window_bounds = array<i64: 1, 128>}, {pipeline_mode = #tpu.pipeline_mode<synchronous>, transform_indices = @transform_3, window_bounds = array<i64: 128, 128>}, {pipeline_mode = #tpu.pipeline_mode<synchronous>, transform_indices = @transform_4, window_bounds = array<i64: 1, 128>}, {pipeline_mode = #tpu.pipeline_mode<synchronous>, transform_indices = @transform_5, window_bounds = array<i64: 128, 128>}, {pipeline_mode = #tpu.pipeline_mode<synchronous>, transform_indices = @transform_6, window_bounds = array<i64: 1, 128>}, {transform_indices = @transform_7, window_bounds = array<i64: 16, 128>}]} {
    %c0_i32 = arith.constant 0 : i32
    %0 = arith.cmpi eq, %arg1, %c0_i32 : i32
    %1 = arith.extui %0 : i1 to i32
    %c0_i32_0 = arith.constant 0 : i32
    %2 = arith.cmpi ne, %1, %c0_i32_0 : i32
    scf.if %2 {
      %c0_18 = arith.constant 0 : index
      %c0_19 = arith.constant 0 : index
      %26 = vector.load %arg2[%c0_18, %c0_19] : memref<16x128xf32, #tpu.memory_space<vmem>>, vector<16x128xf32>
      %cst_20 = arith.constant dense<0.000000e+00> : vector<16xf32>
      %27 = vector.multi_reduction <add>, %26, %cst_20 [1] : vector<16x128xf32> to vector<16xf32>
      %28 = vector.shape_cast %27 : vector<16xf32> to vector<16x1xf32>
      %cst_21 = arith.constant 3.125000e-02 : f32
      %29 = vector.broadcast %cst_21 : f32 to vector<16x1xf32>
      %30 = arith.mulf %28, %29 : vector<16x1xf32>
      %31 = vector.broadcast %30 : vector<16x1xf32> to vector<16x128xf32>
      %32 = arith.subf %26, %31 : vector<16x128xf32>
      %33 = tpu.iota {dimensions = array<i32: 1>} : vector<16x128xi32>
      %c32_i32 = arith.constant 32 : i32
      %34 = vector.broadcast %c32_i32 : i32 to vector<16x128xi32>
      %35 = arith.cmpi slt, %33, %34 : vector<16x128xi32>
      %cst_22 = arith.constant 0.000000e+00 : f32
      %36 = vector.broadcast %cst_22 : f32 to vector<16x128xf32>
      %37 = arith.select %35, %32, %36 : vector<16x128xi1>, vector<16x128xf32>
      %38 = arith.mulf %37, %37 : vector<16x128xf32>
      %cst_23 = arith.constant dense<0.000000e+00> : vector<16xf32>
      %39 = vector.multi_reduction <add>, %38, %cst_23 [1] : vector<16x128xf32> to vector<16xf32>
      %40 = vector.shape_cast %39 : vector<16xf32> to vector<16x1xf32>
      %cst_24 = arith.constant 3.125000e-02 : f32
      %41 = vector.broadcast %cst_24 : f32 to vector<16x1xf32>
      %42 = arith.mulf %40, %41 : vector<16x1xf32>
      %cst_25 = arith.constant 9.99999974E-6 : f32
      %43 = vector.broadcast %cst_25 : f32 to vector<16x1xf32>
      %44 = arith.addf %42, %43 : vector<16x1xf32>
      %45 = math.rsqrt %44 : vector<16x1xf32>
      %46 = vector.broadcast %45 : vector<16x1xf32> to vector<16x128xf32>
      %47 = arith.mulf %37, %46 : vector<16x128xf32>
      %c0_26 = arith.constant 0 : index
      %c0_27 = arith.constant 0 : index
      %48 = vector.load %arg3[%c0_26, %c0_27] : memref<1x128xf32, #tpu.memory_space<vmem>>, vector<1x128xf32>
      %49 = vector.broadcast %48 : vector<1x128xf32> to vector<16x128xf32>
      %50 = arith.mulf %47, %49 : vector<16x128xf32>
      %c0_28 = arith.constant 0 : index
      %c0_29 = arith.constant 0 : index
      %51 = vector.load %arg4[%c0_28, %c0_29] : memref<1x128xf32, #tpu.memory_space<vmem>>, vector<1x128xf32>
      %52 = vector.broadcast %51 : vector<1x128xf32> to vector<16x128xf32>
      %53 = arith.addf %50, %52 : vector<16x128xf32>
      %54 = arith.truncf %53 : vector<16x128xf32> to vector<16x128xbf16>
      %c0_30 = arith.constant 0 : index
      %c0_31 = arith.constant 0 : index
      %55 = vector.load %arg11[%c0_30, %c0_31] : memref<16x128xbf16, #tpu.memory_space<vmem>>, vector<16x128xbf16>
      tpu.vector_store %arg11[%c0_30, %c0_31], %54 {strides = array<i32>} : memref<16x128xbf16, #tpu.memory_space<vmem>>, vector<16x128xbf16>,
      %cst_32 = arith.constant 0.000000e+00 : f32
      %56 = vector.broadcast %cst_32 : f32 to vector<16x128xf32>
      %c0_33 = arith.constant 0 : index
      %c0_34 = arith.constant 0 : index
      %57 = vector.load %arg10[%c0_33, %c0_34] : memref<16x128xf32, #tpu.memory_space<vmem>>, vector<16x128xf32>
      tpu.vector_store %arg10[%c0_33, %c0_34], %56 {strides = array<i32>} : memref<16x128xf32, #tpu.memory_space<vmem>>, vector<16x128xf32>,
    } else {
    }
    %c0 = arith.constant 0 : index
    %c0_1 = arith.constant 0 : index
    %3 = vector.load %arg11[%c0, %c0_1] : memref<16x128xbf16, #tpu.memory_space<vmem>>, vector<16x128xbf16>
    %c0_2 = arith.constant 0 : index
    %c0_3 = arith.constant 0 : index
    %4 = vector.load %arg5[%c0_2, %c0_3] : memref<128x128xbf16, #tpu.memory_space<vmem>>, vector<128x128xbf16>
    %cst = arith.constant dense<0.000000e+00> : vector<16x128xf32>
    %5 = tpu.matmul %3, %4, %cst {dimension_numbers = #tpu.dot_dimension_numbers<[1], [0], [0], [1], [0, 0, 1, 1], [], []>} : vector<16x128xbf16>, vector<128x128xbf16>, vector<16x128xf32> -> vector<16x128xf32>
    %c0_4 = arith.constant 0 : index
    %c0_5 = arith.constant 0 : index
    %6 = vector.load %arg6[%c0_4, %c0_5] : memref<1x128xf32, #tpu.memory_space<vmem>>, vector<1x128xf32>
    %7 = vector.broadcast %6 : vector<1x128xf32> to vector<16x128xf32>
    %8 = arith.addf %5, %7 : vector<16x128xf32>
    %cst_6 = arith.constant 5.000000e-01 : f32
    %9 = vector.broadcast %cst_6 : f32 to vector<16x128xf32>
    %10 = arith.mulf %9, %8 : vector<16x128xf32>
    %cst_7 = arith.constant 0.707106769 : f32
    %11 = vector.broadcast %cst_7 : f32 to vector<16x128xf32>
    %12 = arith.mulf %8, %11 : vector<16x128xf32>
    %13 = math.erf %12 : vector<16x128xf32>
    %cst_8 = arith.constant 1.000000e+00 : f32
    %14 = vector.broadcast %cst_8 : f32 to vector<16x128xf32>
    %15 = arith.addf %14, %13 : vector<16x128xf32>
    %16 = arith.mulf %10, %15 : vector<16x128xf32>
    %c0_9 = arith.constant 0 : index
    %c0_10 = arith.constant 0 : index
    %17 = vector.load %arg10[%c0_9, %c0_10] : memref<16x128xf32, #tpu.memory_space<vmem>>, vector<16x128xf32>
    %18 = arith.truncf %16 : vector<16x128xf32> to vector<16x128xbf16>
    %c0_11 = arith.constant 0 : index
    %c0_12 = arith.constant 0 : index
    %19 = vector.load %arg7[%c0_11, %c0_12] : memref<128x128xbf16, #tpu.memory_space<vmem>>, vector<128x128xbf16>
    %cst_13 = arith.constant dense<0.000000e+00> : vector<16x128xf32>
    %20 = tpu.matmul %18, %19, %cst_13 {dimension_numbers = #tpu.dot_dimension_numbers<[1], [0], [0], [1], [0, 0, 1, 1], [], []>} : vector<16x128xbf16>, vector<128x128xbf16>, vector<16x128xf32> -> vector<16x128xf32>
    %21 = arith.addf %17, %20 : vector<16x128xf32>
    %c0_14 = arith.constant 0 : index
    %c0_15 = arith.constant 0 : index
    %22 = vector.load %arg10[%c0_14, %c0_15] : memref<16x128xf32, #tpu.memory_space<vmem>>, vector<16x128xf32>
    tpu.vector_store %arg10[%c0_14, %c0_15], %21 {strides = array<i32>} : memref<16x128xf32, #tpu.memory_space<vmem>>, vector<16x128xf32>,
    %c0_i32_16 = arith.constant 0 : i32
    %23 = arith.cmpi eq, %arg1, %c0_i32_16 : i32
    %24 = arith.extui %23 : i1 to i32
    %c0_i32_17 = arith.constant 0 : i32
    %25 = arith.cmpi ne, %24, %c0_i32_17 : i32
    scf.if %25 {
      %c0_18 = arith.constant 0 : index
      %c0_19 = arith.constant 0 : index
      %26 = vector.load %arg10[%c0_18, %c0_19] : memref<16x128xf32, #tpu.memory_space<vmem>>, vector<16x128xf32>
      %c0_20 = arith.constant 0 : index
      %c0_21 = arith.constant 0 : index
      %27 = vector.load %arg8[%c0_20, %c0_21] : memref<1x128xf32, #tpu.memory_space<vmem>>, vector<1x128xf32>
      %28 = vector.broadcast %27 : vector<1x128xf32> to vector<16x128xf32>
      %29 = arith.addf %26, %28 : vector<16x128xf32>
      %c0_22 = arith.constant 0 : index
      %c0_23 = arith.constant 0 : index
      %30 = vector.load %arg9[%c0_22, %c0_23] : memref<16x128xf32, #tpu.memory_space<vmem>>, vector<16x128xf32>
      tpu.vector_store %arg9[%c0_22, %c0_23], %29 {strides = array<i32>} : memref<16x128xf32, #tpu.memory_space<vmem>>, vector<16x128xf32>,
    } else {
    }
    return
  }
  func.func @transform_0(%arg0: i32, %arg1: i32) -> (i32, i32) {
    %c0_i32 = arith.constant 0 : i32
    %c0_i32_0 = arith.constant 0 : i32
    return %arg0, %c0_i32 : i32, i32
  }
  func.func @transform_1(%arg0: i32, %arg1: i32) -> (i32, i32) {
    %c0_i32 = arith.constant 0 : i32
    %c0_i32_0 = arith.constant 0 : i32
    %c0_i32_1 = arith.constant 0 : i32
    return %c0_i32, %c0_i32_0 : i32, i32
  }
  func.func @transform_2(%arg0: i32, %arg1: i32) -> (i32, i32) {
    %c0_i32 = arith.constant 0 : i32
    %c0_i32_0 = arith.constant 0 : i32
    %c0_i32_1 = arith.constant 0 : i32
    return %c0_i32, %c0_i32_0 : i32, i32
  }
  func.func @transform_3(%arg0: i32, %arg1: i32) -> (i32, i32) {
    %c0_i32 = arith.constant 0 : i32
    %c0_i32_0 = arith.constant 0 : i32
    return %c0_i32, %arg1 : i32, i32
  }
  func.func @transform_4(%arg0: i32, %arg1: i32) -> (i32, i32) {
    %c0_i32 = arith.constant 0 : i32
    %c0_i32_0 = arith.constant 0 : i32
    return %c0_i32, %arg1 : i32, i32
  }
  func.func @transform_5(%arg0: i32, %arg1: i32) -> (i32, i32) {
    %c0_i32 = arith.constant 0 : i32
    %c0_i32_0 = arith.constant 0 : i32
    return %arg1, %c0_i32 : i32, i32
  }
  func.func @transform_6(%arg0: i32, %arg1: i32) -> (i32, i32) {
    %c0_i32 = arith.constant 0 : i32
    %c0_i32_0 = arith.constant 0 : i32
    %c0_i32_1 = arith.constant 0 : i32
    return %c0_i32, %c0_i32_0 : i32, i32
  }
  func.func @transform_7(%arg0: i32, %arg1: i32) -> (i32, i32) {
    %c0_i32 = arith.constant 0 : i32
    %c0_i32_0 = arith.constant 0 : i32
    return %arg0, %c0_i32 : i32, i32
  }
}

</mosaic_0001>

<llo_original>
// kernel: transformer_mlp.1
$region0: #{transformer_mlp.1}
  #allocation0 [shape = 'u32[]', space=smem, size = 0x4, offset = 0x4, fixed_abs, tag = 'smem constant byte address 0x4 - core index']
  #allocation1 [shape = 'u32[144,128]{1,0:T(1,128)}', space=vmem, size = 0x12000, scoped, tag = 'internal scratch']
  #allocation2 [shape = 'f32[16,128]{1,0:T(8,128)}', space=vmem, size = 0x2000, scoped, tag = 'scratch operand']
  #allocation3 [shape = 'bf16[16,128]{1,0:T(8,128)(2,1)}', space=vmem, size = 0x1000, scoped, tag = 'scratch operand']
  %s0 = inlined_call_operand.vmem [shape: f32[16,128], index: 0, kind: input, shape index: {}]
  %s1 = inlined_call_operand.vmem [shape: f32[1,128], index: 1, kind: input, shape index: {}]
  %s2 = inlined_call_operand.vmem [shape: f32[1,128], index: 2, kind: input, shape index: {}]
  %s3 = inlined_call_operand.vmem [shape: bf16[128,128], index: 3, kind: input, shape index: {}]
  %s4 = inlined_call_operand.vmem [shape: f32[1,128], index: 4, kind: input, shape index: {}]
  %s5 = inlined_call_operand.vmem [shape: bf16[128,128], index: 5, kind: input, shape index: {}]
  %s6 = inlined_call_operand.vmem [shape: f32[1,128], index: 6, kind: input, shape index: {}]
  %s7 = inlined_call_operand.vmem [shape: f32[16,128], index: 7, kind: output, shape index: {}]
  %s8 = sld [smem:[#allocation0]]
  $region46: #{transformer_mlp.1} parent=0
    _
  %s10 = ssub.s32 1, %s8
  %s11 = scalar_select 0, %s10, %s8
  // Predicated region
  $region2: #{transformer_mlp.1} parent=0 // pred_check
    _
  $region3: #{transformer_mlp.1} parent=0 // pred_check_branch
    %13 = sbr.rel (0) target = $region5
  $region4: #{transformer_mlp.1} parent=0 // pred_region
    _
  $region5: #{transformer_mlp.1} parent=0 // pred_fallthru
    _
  // Predicated region
  $region6: #{transformer_mlp.1} parent=0 // pred_check
    _
  $region7: #{transformer_mlp.1} parent=0 // pred_check_branch
    %15 = sbr.rel (0) target = $region9
  $region8: #{transformer_mlp.1} parent=0 // pred_region
    _
  $region9: #{transformer_mlp.1} parent=0 // pred_fallthru
    _
  // Predicated region
  $region10: #{transformer_mlp.1} parent=0 // pred_check
    _
  $region11: #{transformer_mlp.1} parent=0 // pred_check_branch
    %17 = sbr.rel (0) target = $region13
  $region12: #{transformer_mlp.1} parent=0 // pred_region
    _
  $region13: #{transformer_mlp.1} parent=0 // pred_fallthru
    _
  // Predicated region
  $region14: #{transformer_mlp.1} parent=0 // pred_check
    _
  $region15: #{transformer_mlp.1} parent=0 // pred_check_branch
    %19 = sbr.rel (0) target = $region17
  $region16: #{transformer_mlp.1} parent=0 // pred_region
    _
  $region17: #{transformer_mlp.1} parent=0 // pred_fallthru
    _
  // Predicated region
  $region18: #{transformer_mlp.1} parent=0 // pred_check
    _
  $region19: #{transformer_mlp.1} parent=0 // pred_check_branch
    %21 = sbr.rel (0) target = $region21
  $region20: #{transformer_mlp.1} parent=0 // pred_region
    _
  $region21: #{transformer_mlp.1} parent=0 // pred_fallthru
    _
  // Predicated region
  $region22: #{transformer_mlp.1} parent=0 // pred_check
    _
  $region23: #{transformer_mlp.1} parent=0 // pred_check_branch
    %23 = sbr.rel (0) target = $region25
  $region24: #{transformer_mlp.1} parent=0 // pred_region
    _
  $region25: #{transformer_mlp.1} parent=0 // pred_fallthru
    _
  // Predicated region
  $region26: #{transformer_mlp.1} parent=0 // pred_check
    _
  $region27: #{transformer_mlp.1} parent=0 // pred_check_branch
    %25 = sbr.rel (0) target = $region29
  $region28: #{transformer_mlp.1} parent=0 // pred_region
    _
  $region29: #{transformer_mlp.1} parent=0 // pred_fallthru
    _
  %p27 = scmp.eq.s32.totalorder 0, 0
  // Predicated region
  $region30: #{transformer_mlp.1} parent=0 // pred_check
    %p28 = pneg %p27
  $region31: #{transformer_mlp.1} parent=0 // pred_check_branch
    %30 = sbr.rel (%p28) target = $region33
  $region32: #{transformer_mlp.1} parent=0 // pred_region
    %v31 = vld [vmem:[%s0] sm:$0xff]
    %v32 = vld [vmem:[%s0 + $0x8] sm:$0xff]
    %33 = vadd.xlane.f32.xlu0 %v31
    %v34 = vpop.xlane.xlu0 %33
    %35 = vadd.xlane.f32.xlu0 %v32
    %v36 = vpop.xlane.xlu0 %35
    %v37 = vmul.f32 %v34, 0.03125
    %v38 = vmul.f32 %v36, 0.03125
    %v39 = vsub.f32 %v31, %v37
    %v40 = vsub.f32 %v32, %v38
    %v41 = vlaneseq
    %v42 = vand.u32 %v41, 127
    %vm43 = vcmp.lt.s32.totalorder %v42, 32
    %v44 = vsel %vm43, %v39, 0.0
    %v45 = vsel %vm43, %v40, 0.0
    %v46 = vmul.f32 %v44, %v44
    %v47 = vmul.f32 %v45, %v45
    %48 = vadd.xlane.f32.xlu0 %v46
    %v49 = vpop.xlane.xlu0 %48
    %50 = vadd.xlane.f32.xlu0 %v47
    %v51 = vpop.xlane.xlu0 %50
    %v52 = vmul.f32 %v49, 0.03125
    %v53 = vmul.f32 %v51, 0.03125
    %v54 = vadd.f32 %v52, 1e-05
    %v55 = vadd.f32 %v53, 1e-05
    %v56 = vrsqrt.pop %v54
    %v57 = vrsqrt.pop %v55
    %v58 = vmul.f32 %v44, %v56
    %v59 = vmul.f32 %v45, %v57
    %v60 = vld [vmem:[%s1] sm:$0x1]
    %v62 = vlaneseq
    %v63 = vshrl.u32 %v62, 7
    %v64 = vsub.s32 0, %v63
    %v65 = vrot.slane %v60, %v64
    %v67 = vmul.f32 %v58, %v65
    %v68 = vmul.f32 %v59, %v65
    %v69 = vld [vmem:[%s2] sm:$0x1]
    %v71 = vlaneseq
    %v72 = vshrl.u32 %v71, 7
    %v73 = vsub.s32 0, %v72
    %v74 = vrot.slane %v69, %v73
    %v76 = vadd.f32 %v67, %v74
    %v77 = vadd.f32 %v68, %v74
    %v78 = vpack.c.bf16 %v77, %v76
    %v80 = vunpack.c.l.b16 %v78
    %v81 = vunpack.c.h.b16 %v78
    %v82 = vpack.c.b16 %v80, %v80
    %v83 = vpack.c.b16 %v81, %v81
    %86 = vst [vmem:[#allocation3] sm:$0xf] %v82
    %87 = vst [vmem:[#allocation3 + $0x4] sm:$0xf] %v83
    %88 = vst [vmem:[#allocation2] sm:$0xff] 0.0
    %89 = vst [vmem:[#allocation2 + $0x8] sm:$0xff] 0.0
  $region33: #{transformer_mlp.1} parent=0 // pred_fallthru
    _
  %v90 = vld [vmem:[#allocation3] sm:$0xf]
  %v91 = vld [vmem:[#allocation3 + $0x4] sm:$0xf]
  %v92 = vld [vmem:[%s3] sm:$0xf]
  %v93 = vld [vmem:[%s3 + $0x4] sm:$0xf]
  %v94 = vld [vmem:[%s3 + $0x8] sm:$0xf]
  %v95 = vld [vmem:[%s3 + $0xc] sm:$0xf]
  %v96 = vld [vmem:[%s3 + $0x10] sm:$0xf]
  %v97 = vld [vmem:[%s3 + $0x14] sm:$0xf]
  %v98 = vld [vmem:[%s3 + $0x18] sm:$0xf]
  %v99 = vld [vmem:[%s3 + $0x1c] sm:$0xf]
  %v100 = vld [vmem:[%s3 + $0x20] sm:$0xf]
  %v101 = vld [vmem:[%s3 + $0x24] sm:$0xf]
  %v102 = vld [vmem:[%s3 + $0x28] sm:$0xf]
  %v103 = vld [vmem:[%s3 + $0x2c] sm:$0xf]
  %v104 = vld [vmem:[%s3 + $0x30] sm:$0xf]
  %v105 = vld [vmem:[%s3 + $0x34] sm:$0xf]
  %v106 = vld [vmem:[%s3 + $0x38] sm:$0xf]
  %v107 = vld [vmem:[%s3 + $0x3c] sm:$0xf]
  %v108 = vld [vmem:[%s4] sm:$0x1]
  %v110 = vlaneseq
  %v111 = vshrl.u32 %v110, 7
  %v112 = vsub.s32 0, %v111
  %v113 = vrot.slane %v108, %v112
  %v117 = vunpack.c.l.b16 %v90
  %v118 = vunpack.c.l.b16 %v91
  %v119 = vpack.c.b16 %v118, %v117
  %v137 = vunpack.c.l.b16 %v92
  %v138 = vunpack.c.l.b16 %v93
  %v139 = vunpack.c.l.b16 %v94
  %v140 = vunpack.c.l.b16 %v95
  %v141 = vunpack.c.l.b16 %v96
  %v142 = vunpack.c.l.b16 %v97
  %v143 = vunpack.c.l.b16 %v98
  %v144 = vunpack.c.l.b16 %v99
  %v145 = vunpack.c.l.b16 %v100
  %v146 = vunpack.c.l.b16 %v101
  %v147 = vunpack.c.l.b16 %v102
  %v148 = vunpack.c.l.b16 %v103
  %v149 = vunpack.c.l.b16 %v104
  %v150 = vunpack.c.l.b16 %v105
  %v151 = vunpack.c.l.b16 %v106
  %v152 = vunpack.c.l.b16 %v107
  %v153 = vpack.c.b16 %v138, %v137
  %v154 = vpack.c.b16 %v140, %v139
  %v155 = vpack.c.b16 %v142, %v141
  %v156 = vpack.c.b16 %v144, %v143
  %v157 = vpack.c.b16 %v146, %v145
  %v158 = vpack.c.b16 %v148, %v147
  %v159 = vpack.c.b16 %v150, %v149
  %v160 = vpack.c.b16 %v152, %v151
  %169 = vmatprep.subr.bf16.mxu0 0
  %170 = vmatpush1.bf16.msra.mxu0 %v160
  %171 = vmatprep.subr.bf16.mxu0 0
  %172 = vmatpush1.bf16.msra.mxu0 %v159
  %173 = vmatprep.subr.bf16.mxu0 0
  %174 = vmatpush1.bf16.msra.mxu0 %v158
  %175 = vmatprep.subr.bf16.mxu0 0
  %176 = vmatpush1.bf16.msra.mxu0 %v157
  %177 = vmatprep.subr.bf16.mxu0 0
  %178 = vmatpush1.bf16.msra.mxu0 %v156
  %179 = vmatprep.subr.bf16.mxu0 0
  %180 = vmatpush1.bf16.msra.mxu0 %v155
  %181 = vmatprep.subr.bf16.mxu0 0
  %182 = vmatpush1.bf16.msra.mxu0 %v154
  %183 = vmatprep.subr.bf16.mxu0 0
  %184 = vmatpush1.bf16.msra.mxu0 %v153
  %185 = vmatprep.subr.bf16.mxu0 0
  %186 = vmatpush2.bf16.msra.mxu0 0
  %187 = vmatprep.subr.bf16.mxu0 0
  %188 = vmatpush2.bf16.msra.mxu0 0
  %189 = vmatprep.subr.bf16.mxu0 0
  %190 = vmatpush2.bf16.msra.mxu0 0
  %191 = vmatprep.subr.bf16.mxu0 0
  %192 = vmatpush2.bf16.msra.mxu0 0
  %193 = vmatprep.subr.bf16.mxu0 0
  %194 = vmatpush2.bf16.msra.mxu0 0
  %195 = vmatprep.subr.bf16.mxu0 0
  %196 = vmatpush2.bf16.msra.mxu0 0
  %197 = vmatprep.subr.bf16.mxu0 0
  %198 = vmatpush2.bf16.msra.mxu0 0
  %199 = vmatprep.subr.bf16.mxu0 0
  %200 = vmatpush2.bf16.msra.mxu0 0
  %201 = vmatprep.mubr.bf16.mxu0 0
  %202 = vmatmul.mubr.bf16.gmra.mxu0 %v119
  %v203 = vpop.f32.mrf.mxu0
  %v204 = vadd.f32 %v113, %v203
  %v205 = vpop.f32.mrf.mxu0
  %v206 = vpop.f32.mrf.mxu0
  %v207 = vadd.f32 %v113, %v206
  %v208 = vpop.f32.mrf.mxu0
  %209 = vdwg.mxu0
  %v210 = vmul.f32 %v204, 0.5
  %v211 = vmul.f32 %v207, 0.5
  %v212 = vmul.f32 %v204, 0.70710677
  %v213 = vmul.f32 %v207, 0.70710677
  %v214 = verf.f32.pop %v212
  %v215 = verf.f32.pop %v213
  %v216 = vadd.f32 %v214, 1.0
  %v217 = vadd.f32 %v215, 1.0
  %v218 = vmul.f32 %v210, %v216
  %v219 = vmul.f32 %v211, %v217
  %v220 = vld [vmem:[#allocation2] sm:$0xff]
  %v221 = vld [vmem:[#allocation2 + $0x8] sm:$0xff]
  %v222 = vpack.c.bf16 %v219, %v218
  %v223 = vld [vmem:[%s5] sm:$0xf]
  %v224 = vld [vmem:[%s5 + $0x4] sm:$0xf]
  %v225 = vld [vmem:[%s5 + $0x8] sm:$0xf]
  %v226 = vld [vmem:[%s5 + $0xc] sm:$0xf]
  %v227 = vld [vmem:[%s5 + $0x10] sm:$0xf]
  %v228 = vld [vmem:[%s5 + $0x14] sm:$0xf]
  %v229 = vld [vmem:[%s5 + $0x18] sm:$0xf]
  %v230 = vld [vmem:[%s5 + $0x1c] sm:$0xf]
  %v231 = vld [vmem:[%s5 + $0x20] sm:$0xf]
  %v232 = vld [vmem:[%s5 + $0x24] sm:$0xf]
  %v233 = vld [vmem:[%s5 + $0x28] sm:$0xf]
  %v234 = vld [vmem:[%s5 + $0x2c] sm:$0xf]
  %v235 = vld [vmem:[%s5 + $0x30] sm:$0xf]
  %v236 = vld [vmem:[%s5 + $0x34] sm:$0xf]
  %v237 = vld [vmem:[%s5 + $0x38] sm:$0xf]
  %v238 = vld [vmem:[%s5 + $0x3c] sm:$0xf]
  %v255 = vunpack.c.l.b16 %v223
  %v256 = vunpack.c.l.b16 %v224
  %v257 = vunpack.c.l.b16 %v225
  %v258 = vunpack.c.l.b16 %v226
  %v259 = vunpack.c.l.b16 %v227
  %v260 = vunpack.c.l.b16 %v228
  %v261 = vunpack.c.l.b16 %v229
  %v262 = vunpack.c.l.b16 %v230
  %v263 = vunpack.c.l.b16 %v231
  %v264 = vunpack.c.l.b16 %v232
  %v265 = vunpack.c.l.b16 %v233
  %v266 = vunpack.c.l.b16 %v234
  %v267 = vunpack.c.l.b16 %v235
  %v268 = vunpack.c.l.b16 %v236
  %v269 = vunpack.c.l.b16 %v237
  %v270 = vunpack.c.l.b16 %v238
  %v271 = vpack.c.b16 %v256, %v255
  %v272 = vpack.c.b16 %v258, %v257
  %v273 = vpack.c.b16 %v260, %v259
  %v274 = vpack.c.b16 %v262, %v261
  %v275 = vpack.c.b16 %v264, %v263
  %v276 = vpack.c.b16 %v266, %v265
  %v277 = vpack.c.b16 %v268, %v267
  %v278 = vpack.c.b16 %v270, %v269
  %287 = vmatprep.subr.bf16.mxu0 0
  %288 = vmatpush1.bf16.msra.mxu0 %v278
  %289 = vmatprep.subr.bf16.mxu0 0
  %290 = vmatpush1.bf16.msra.mxu0 %v277
  %291 = vmatprep.subr.bf16.mxu0 0
  %292 = vmatpush1.bf16.msra.mxu0 %v276
  %293 = vmatprep.subr.bf16.mxu0 0
  %294 = vmatpush1.bf16.msra.mxu0 %v275
  %295 = vmatprep.subr.bf16.mxu0 0
  %296 = vmatpush1.bf16.msra.mxu0 %v274
  %297 = vmatprep.subr.bf16.mxu0 0
  %298 = vmatpush1.bf16.msra.mxu0 %v273
  %299 = vmatprep.subr.bf16.mxu0 0
  %300 = vmatpush1.bf16.msra.mxu0 %v272
  %301 = vmatprep.subr.bf16.mxu0 0
  %302 = vmatpush1.bf16.msra.mxu0 %v271
  %303 = vmatprep.subr.bf16.mxu0 0
  %304 = vmatpush2.bf16.msra.mxu0 0
  %305 = vmatprep.subr.bf16.mxu0 0
  %306 = vmatpush2.bf16.msra.mxu0 0
  %307 = vmatprep.subr.bf16.mxu0 0
  %308 = vmatpush2.bf16.msra.mxu0 0
  %309 = vmatprep.subr.bf16.mxu0 0
  %310 = vmatpush2.bf16.msra.mxu0 0
  %311 = vmatprep.subr.bf16.mxu0 0
  %312 = vmatpush2.bf16.msra.mxu0 0
  %313 = vmatprep.subr.bf16.mxu0 0
  %314 = vmatpush2.bf16.msra.mxu0 0
  %315 = vmatprep.subr.bf16.mxu0 0
  %316 = vmatpush2.bf16.msra.mxu0 0
  %317 = vmatprep.subr.bf16.mxu0 0
  %318 = vmatpush2.bf16.msra.mxu0 0
  %319 = vmatprep.mubr.bf16.mxu0 0
  %320 = vmatmul.mubr.bf16.gmra.mxu0 %v222
  %v321 = vpop.f32.mrf.mxu0
  %v322 = vadd.f32 0.0, %v321
  %v323 = vpop.f32.mrf.mxu0
  %v324 = vpop.f32.mrf.mxu0
  %v325 = vadd.f32 0.0, %v324
  %v326 = vpop.f32.mrf.mxu0
  %327 = vdwg.mxu0
  %v328 = vadd.f32 %v220, %v322
  %v329 = vadd.f32 %v221, %v325
  %330 = vst [vmem:[#allocation2] sm:$0xff] %v328
  %331 = vst [vmem:[#allocation2 + $0x8] sm:$0xff] %v329
  // Predicated region
  $region34: #{transformer_mlp.1} parent=0 // pred_check
    %p332 = pneg %p27
  $region35: #{transformer_mlp.1} parent=0 // pred_check_branch
    %334 = sbr.rel (%p332) target = $region37
  $region36: #{transformer_mlp.1} parent=0 // pred_region
    %v335 = vld [vmem:[#allocation2] sm:$0xff]
    %v336 = vld [vmem:[#allocation2 + $0x8] sm:$0xff]
    %v337 = vld [vmem:[%s6] sm:$0x1]
    %v339 = vlaneseq
    %v340 = vshrl.u32 %v339, 7
    %v341 = vsub.s32 0, %v340
    %v342 = vrot.slane %v337, %v341
    %v344 = vadd.f32 %v335, %v342
    %v345 = vadd.f32 %v336, %v342
    %346 = vst [vmem:[%s7] sm:$0xff] %v344
    %347 = vst [vmem:[%s7 + $0x8] sm:$0xff] %v345
  $region37: #{transformer_mlp.1} parent=0 // pred_fallthru
    _
  // Predicated region
  $region38: #{transformer_mlp.1} parent=0 // pred_check
    _
  $region39: #{transformer_mlp.1} parent=0 // pred_check_branch
    %349 = sbr.rel (0) target = $region41
  $region40: #{transformer_mlp.1} parent=0 // pred_region
    _
  $region41: #{transformer_mlp.1} parent=0 // pred_fallthru
    _
  // Predicated region
  $region42: #{transformer_mlp.1} parent=0 // pred_check
    _
  $region43: #{transformer_mlp.1} parent=0 // pred_check_branch
    %351 = sbr.rel (0) target = $region45
  $region44: #{transformer_mlp.1} parent=0 // pred_region
    _
  $region45: #{transformer_mlp.1} parent=0 // pred_fallthru
    _

</llo_original>
